<compile_context>
chip_gen: v7x
topology: tpu7x:2x2x1
jax: 0.10.0
libtpu: 0.0.40
codegen_flags: <defaults>
</compile_context>

<pallas_src>
import jax
import jax.numpy as jnp
from jax.experimental import pallas as pl
from jax.experimental.pallas import tpu as pltpu

IN = 4          # CartPole state dim
IN_PAD = 8      # fc1 contraction dim padded to one sublane group
HID = 128       # fc1 output width
OUT_W = 8       # narrow output slab: col 0,1 = probs, col 2 = value, 3..7 = 0


def policy_kernel(x_ref, w1_ref, b1_ref, w23_ref, b23_ref, out_ref):
    """One batch tile; weights stay VMEM-resident across grid steps."""
    # fc1 on the MXU (K padded 4->8 with zeros); bias + relu on the VPU.
    h = jnp.dot(x_ref[...], w1_ref[...],
                preferred_element_type=jnp.float32)          # (tb, 128)
    h = jnp.maximum(h + b1_ref[...], 0.0)

    # Fused head matmul: only the 8 live lanes are produced.
    # cols 0,1 = fc2 logits, col 2 = fc3 value, cols 3..7 = 0 (zero weights/bias).
    out = jnp.dot(h, w23_ref[...],
                  preferred_element_type=jnp.float32) + b23_ref[...]   # (tb, 8)

    # 2-class softmax via the sigmoid identity (exp + reciprocal on the EUP).
    l0 = out[:, 0:1]
    l1 = out[:, 1:2]
    p0 = pl.reciprocal(1.0 + jnp.exp(l1 - l0), approx=True)
    p1 = 1.0 - p0

    # Store the narrow slab once, then overwrite the two prob lanes with
    # narrow masked stores (no iota/where layout pass over the tile).
    out_ref[...] = out
    out_ref[:, 0:1] = p0
    out_ref[:, 1:2] = p1


def pack_params(raw_params):
    """Pack raw (w1,b1,w2,b2,w3,b3) into the kernel's fused layout."""
    w1, b1, w2, b2, w3, b3 = raw_params
    # fc1 weight zero-padded to (8, 128) so fc1 is a sublane-aligned MXU matmul.
    w1p = jnp.zeros((IN_PAD, HID), jnp.float32).at[:IN, :].set(w1)
    # Head weight/bias packed into 8 lanes: cols 0,1 = fc2, col 2 = fc3, rest 0.
    w23 = jnp.zeros((HID, OUT_W), jnp.float32).at[:, 0:2].set(w2).at[:, 2:3].set(w3)
    b23 = jnp.zeros((1, OUT_W), jnp.float32).at[:, 0:2].set(b2).at[:, 2:3].set(b3)
    return (w1p, b1, w23, b23)


def _dimension_semantics(num_tiles):
    """CORE_PARALLEL on v7x (2 TCs/chip) so the batch axis is really split;
    measured-neutral ARBITRARY elsewhere."""
    try:
        kind = jax.devices()[0].device_kind.lower()
    except Exception:  # pragma: no cover
        kind = ""
    if num_tiles >= 2 and ("v7" in kind or "7x" in kind or "tpu7" in kind):
        return (pltpu.CORE_PARALLEL,)
    return (pltpu.ARBITRARY,)


def policy_forward(x, packed_params, *, block_b=2048):
    """x: (B, 4) float32.  Returns (probs (B, 2), values (B, 1))."""
    w1p, b1, w23, b23 = packed_params
    B = x.shape[0]

    # Zero-pad the feature dim 4 -> 8 (32 B/row, negligible) so fc1 runs on
    # the MXU with a one-vreg RHS.
    x8 = jnp.pad(x, ((0, 0), (0, IN_PAD - IN)))

    # Batch tile: large when batched up (amortizes the ~0.35 us/step overhead),
    # otherwise the tiny batch rounded up to the f32 sublane multiple of 8.
    block_b = max(8, (block_b // 8) * 8)
    tb = min(block_b, ((B + 7) // 8) * 8)
    grid = (pl.cdiv(B, tb),)          # ragged last block; no jnp.pad of rows

    flops = B * (2 * IN_PAD * HID + 2 * HID * OUT_W)
    transcendentals = 2 * B            # exp + approx reciprocal per row
    bytes_accessed = (B * IN_PAD + B * OUT_W
                      + w1p.size + b1.size + w23.size + b23.size) * 4

    slab = pl.pallas_call(
        policy_kernel,
        out_shape=jax.ShapeDtypeStruct((B, OUT_W), jnp.float32),
        grid=grid,
        in_specs=[
            pl.BlockSpec((tb, IN_PAD), lambda i: (i, 0)),    # x: streamed by tile
            pl.BlockSpec((IN_PAD, HID), lambda i: (0, 0)),   # w1: VMEM-resident
            pl.BlockSpec((1, HID), lambda i: (0, 0)),        # b1: VMEM-resident
            pl.BlockSpec((HID, OUT_W), lambda i: (0, 0)),    # packed head weight
            pl.BlockSpec((1, OUT_W), lambda i: (0, 0)),      # packed head bias
        ],
        out_specs=pl.BlockSpec((tb, OUT_W), lambda i: (i, 0)),
        compiler_params=pltpu.CompilerParams(
            dimension_semantics=_dimension_semantics(grid[0]),
        ),
        cost_estimate=pl.CostEstimate(
            flops=flops, transcendentals=transcendentals,
            bytes_accessed=bytes_accessed),
    )(x8, w1p, b1, w23, b23)

    probs = slab[:, 0:2]
    values = slab[:, 2:3]
    return probs, values


def init_params(key):
    """Deterministic synthetic init matching nn.Linear shapes.

    PyTorch stores Linear weight as (out, in); we store the transpose (in, out)
    so the kernel computes x @ W + b directly. Biases are 2-D (1, out).
    """
    k1, k2, k3, k4, k5, k6 = jax.random.split(key, 6)

    def uinit(k, shape, fan_in):
        bound = 1.0 / jnp.sqrt(fan_in)
        return jax.random.uniform(k, shape, jnp.float32, -bound, bound)

    w1 = uinit(k1, (IN, HID), 4.0)      # fc1.weight.T
    b1 = uinit(k2, (1, HID), 4.0)       # fc1.bias
    w2 = uinit(k3, (HID, 2), 128.0)     # fc2.weight.T
    b2 = uinit(k4, (1, 2), 128.0)       # fc2.bias
    w3 = uinit(k5, (HID, 1), 128.0)     # fc3.weight.T
    b3 = uinit(k6, (1, 1), 128.0)       # fc3.bias
    return (w1, b1, w2, b2, w3, b3)


def policy_forward_ref(x, raw_params):
    """Pure-JAX reference for correctness checks."""
    w1, b1, w2, b2, w3, b3 = raw_params
    h = jnp.maximum(x @ w1 + b1, 0.0)
    probs = jax.nn.softmax(h @ w2 + b2, axis=-1)
    values = h @ w3 + b3
    return probs, values


if __name__ == "__main__":
    key = jax.random.PRNGKey(0)
    kparam, kx1, kx2, kx3 = jax.random.split(key, 4)

    raw_params = init_params(kparam)
    packed_params = pack_params(raw_params)

    def check(x, block_b=2048):
        probs, values = policy_forward(x, packed_params, block_b=block_b)
        jax.block_until_ready((probs, values))
        probs_ref, values_ref = policy_forward_ref(x, raw_params)
        B = x.shape[0]
        assert probs.shape == (B, 2) and values.shape == (B, 1)
        # Probs use the EUP's approximate reciprocal (per perf review); keep a
        # slightly looser tolerance than the exact f32 reference.
        assert jnp.allclose(probs, probs_ref, atol=2e-3, rtol=2e-3)
        assert jnp.allclose(values, values_ref, atol=1e-4, rtol=1e-4)
        assert jnp.allclose(jnp.sum(probs, axis=-1), 1.0, atol=1e-5)

    # Sublane-aligned small batch.
    check(jax.random.normal(kx1, (8, IN), jnp.float32))
    # Non-multiple-of-8 batch: single ragged tile (masked last rows).
    check(jax.random.normal(kx2, (5, IN), jnp.float32))
    # Multi-tile grid with a partial last block (no full-tile padding pass).
    check(jax.random.normal(kx3, (260, IN), jnp.float32), block_b=128)

    print("KERNEL_OK")
</pallas_src>

<mosaic_0001>
module attributes {stable_mosaic.version = 11 : i64} {
  func.func @policy_kernel(%arg0: i32, %arg1: memref<8x8xf32, #tpu.memory_space<vmem>>, %arg2: memref<8x128xf32, #tpu.memory_space<vmem>>, %arg3: memref<1x128xf32, #tpu.memory_space<vmem>>, %arg4: memref<128x8xf32, #tpu.memory_space<vmem>>, %arg5: memref<1x8xf32, #tpu.memory_space<vmem>>, %arg6: memref<8x8xf32, #tpu.memory_space<vmem>>) attributes {dimension_semantics = [#tpu.dimension_semantics<arbitrary>], iteration_bounds = array<i64: 1>, scalar_prefetch = 0 : i64, scratch_operands = 0 : i64, tpu.core_type = #tpu.core_type<tc>, window_params = [{transform_indices = @transform_0, window_bounds = array<i64: 8, 8>}, {pipeline_mode = #tpu.pipeline_mode<synchronous>, transform_indices = @transform_1, window_bounds = array<i64: 8, 128>}, {pipeline_mode = #tpu.pipeline_mode<synchronous>, transform_indices = @transform_2, window_bounds = array<i64: 1, 128>}, {pipeline_mode = #tpu.pipeline_mode<synchronous>, transform_indices = @transform_3, window_bounds = array<i64: 128, 8>}, {pipeline_mode = #tpu.pipeline_mode<synchronous>, transform_indices = @transform_4, window_bounds = array<i64: 1, 8>}, {transform_indices = @transform_5, window_bounds = array<i64: 8, 8>}]} {
    %c0 = arith.constant 0 : index
    %c0_0 = arith.constant 0 : index
    %0 = vector.load %arg1[%c0, %c0_0] : memref<8x8xf32, #tpu.memory_space<vmem>>, vector<8x8xf32>
    %c0_1 = arith.constant 0 : index
    %c0_2 = arith.constant 0 : index
    %1 = vector.load %arg2[%c0_1, %c0_2] : memref<8x128xf32, #tpu.memory_space<vmem>>, vector<8x128xf32>
    %cst = arith.constant dense<0.000000e+00> : vector<8x128xf32>
    %2 = tpu.matmul %0, %1, %cst {dimension_numbers = #tpu.dot_dimension_numbers<[1], [0], [0], [1], [0, 0, 1, 1], [], []>} : vector<8x8xf32>, vector<8x128xf32>, vector<8x128xf32> -> vector<8x128xf32>
    %c0_3 = arith.constant 0 : index
    %c0_4 = arith.constant 0 : index
    %3 = vector.load %arg3[%c0_3, %c0_4] : memref<1x128xf32, #tpu.memory_space<vmem>>, vector<1x128xf32>
    %4 = vector.broadcast %3 : vector<1x128xf32> to vector<8x128xf32>
    %5 = arith.addf %2, %4 : vector<8x128xf32>
    %cst_5 = arith.constant 0.000000e+00 : f32
    %6 = vector.broadcast %cst_5 : f32 to vector<8x128xf32>
    %7 = arith.maximumf %5, %6 : vector<8x128xf32>
    %c0_6 = arith.constant 0 : index
    %c0_7 = arith.constant 0 : index
    %8 = vector.load %arg4[%c0_6, %c0_7] : memref<128x8xf32, #tpu.memory_space<vmem>>, vector<128x8xf32>
    %cst_8 = arith.constant dense<0.000000e+00> : vector<8x8xf32>
    %9 = tpu.matmul %7, %8, %cst_8 {dimension_numbers = #tpu.dot_dimension_numbers<[1], [0], [0], [1], [0, 0, 1, 1], [], []>} : vector<8x128xf32>, vector<128x8xf32>, vector<8x8xf32> -> vector<8x8xf32>
    %c0_9 = arith.constant 0 : index
    %c0_10 = arith.constant 0 : index
    %10 = vector.load %arg5[%c0_9, %c0_10] : memref<1x8xf32, #tpu.memory_space<vmem>>, vector<1x8xf32>
    %11 = vector.broadcast %10 : vector<1x8xf32> to vector<8x8xf32>
    %12 = arith.addf %9, %11 : vector<8x8xf32>
    %13 = vector.extract_strided_slice %12 {offsets = [0, 0], sizes = [8, 1], strides = [1, 1]} : vector<8x8xf32> to vector<8x1xf32>
    %14 = vector.extract_strided_slice %12 {offsets = [0, 1], sizes = [8, 1], strides = [1, 1]} : vector<8x8xf32> to vector<8x1xf32>
    %15 = arith.subf %14, %13 : vector<8x1xf32>
    %16 = math.exp %15 : vector<8x1xf32>
    %cst_11 = arith.constant 1.000000e+00 : f32
    %17 = vector.broadcast %cst_11 : f32 to vector<8x1xf32>
    %18 = arith.addf %17, %16 : vector<8x1xf32>
    %19 = tpu.reciprocal %18 {approx = true} : vector<8x1xf32> -> vector<8x1xf32>
    %cst_12 = arith.constant 1.000000e+00 : f32
    %20 = vector.broadcast %cst_12 : f32 to vector<8x1xf32>
    %21 = arith.subf %20, %19 : vector<8x1xf32>
    %c0_13 = arith.constant 0 : index
    %c0_14 = arith.constant 0 : index
    %22 = vector.load %arg6[%c0_13, %c0_14] : memref<8x8xf32, #tpu.memory_space<vmem>>, vector<8x8xf32>
    tpu.vector_store %arg6[%c0_13, %c0_14], %12 {strides = array<i32>} : memref<8x8xf32, #tpu.memory_space<vmem>>, vector<8x8xf32>,
    %c0_15 = arith.constant 0 : index
    %c0_16 = arith.constant 0 : index
    %23 = vector.load %arg6[%c0_15, %c0_16] : memref<8x8xf32, #tpu.memory_space<vmem>>, vector<8x1xf32>
    tpu.vector_store %arg6[%c0_15, %c0_16], %19 {strides = array<i32>} : memref<8x8xf32, #tpu.memory_space<vmem>>, vector<8x1xf32>,
    %c0_17 = arith.constant 0 : index
    %c1 = arith.constant 1 : index
    %24 = vector.load %arg6[%c0_17, %c1] : memref<8x8xf32, #tpu.memory_space<vmem>>, vector<8x1xf32>
    tpu.vector_store %arg6[%c0_17, %c1], %21 {strides = array<i32>} : memref<8x8xf32, #tpu.memory_space<vmem>>, vector<8x1xf32>,
    return
  }
  func.func @transform_0(%arg0: i32) -> (i32, i32) {
    %c0_i32 = arith.constant 0 : i32
    %c0_i32_0 = arith.constant 0 : i32
    return %arg0, %c0_i32 : i32, i32
  }
  func.func @transform_1(%arg0: i32) -> (i32, i32) {
    %c0_i32 = arith.constant 0 : i32
    %c0_i32_0 = arith.constant 0 : i32
    %c0_i32_1 = arith.constant 0 : i32
    return %c0_i32, %c0_i32_0 : i32, i32
  }
  func.func @transform_2(%arg0: i32) -> (i32, i32) {
    %c0_i32 = arith.constant 0 : i32
    %c0_i32_0 = arith.constant 0 : i32
    %c0_i32_1 = arith.constant 0 : i32
    return %c0_i32, %c0_i32_0 : i32, i32
  }
  func.func @transform_3(%arg0: i32) -> (i32, i32) {
    %c0_i32 = arith.constant 0 : i32
    %c0_i32_0 = arith.constant 0 : i32
    %c0_i32_1 = arith.constant 0 : i32
    return %c0_i32, %c0_i32_0 : i32, i32
  }
  func.func @transform_4(%arg0: i32) -> (i32, i32) {
    %c0_i32 = arith.constant 0 : i32
    %c0_i32_0 = arith.constant 0 : i32
    %c0_i32_1 = arith.constant 0 : i32
    return %c0_i32, %c0_i32_0 : i32, i32
  }
  func.func @transform_5(%arg0: i32) -> (i32, i32) {
    %c0_i32 = arith.constant 0 : i32
    %c0_i32_0 = arith.constant 0 : i32
    return %arg0, %c0_i32 : i32, i32
  }
}

</mosaic_0001>

<llo_original>
// kernel: tpu_custom_call.1
$region0: #{tpu_custom_call.1}
  #allocation0 [shape = 'u32[]', space=smem, size = 0x4, offset = 0x4, fixed_abs, tag = 'smem constant byte address 0x4 - core index']
  #allocation1 [shape = 'u32[144,128]{1,0:T(1,128)}', space=vmem, size = 0x12000, scoped, tag = 'internal scratch']
  %s0 = inlined_call_operand.vmem [shape: f32[8,8], index: 0, kind: input, shape index: {}]
  %s1 = inlined_call_operand.vmem [shape: f32[8,128], index: 1, kind: input, shape index: {}]
  %s2 = inlined_call_operand.vmem [shape: f32[1,128], index: 2, kind: input, shape index: {}]
  %s3 = inlined_call_operand.vmem [shape: f32[128,8], index: 3, kind: input, shape index: {}]
  %s4 = inlined_call_operand.vmem [shape: f32[1,8], index: 4, kind: input, shape index: {}]
  %s5 = inlined_call_operand.hbm [shape: f32[8,8], index: 5, kind: output, shape index: {}]
  %s6 = sld [smem:[#allocation0]]
  $region30: #{tpu_custom_call.1} parent=0
    _
  %s8 = ssub.s32 1, %s6
  %s9 = scalar_select 0, %s8, %s6
  $region1: #{tpu_custom_call.1} parent=0
    #allocation2 [shape = 'u8[4096]{0}', space=vmem, size = 0x1000, scoped, tag = 'output window, operand 0, single buffered']
    #allocation3 [shape = 's32[1]{0}', space=sflag, size = 0x4, scoped, tag = 'scoped memory for tpu_custom_call.1']
    %10 = vsyncpa [#allocation3], 0
    // Predicated region
    $region2: #{tpu_custom_call.1} parent=1 // pred_check
      _
    $region3: #{tpu_custom_call.1} parent=1 // pred_check_branch
      %12 = sbr.rel (0) target = $region5
    $region4: #{tpu_custom_call.1} parent=1 // pred_region
      _
    $region5: #{tpu_custom_call.1} parent=1 // pred_fallthru
      _
    // Predicated region
    $region6: #{tpu_custom_call.1} parent=1 // pred_check
      _
    $region7: #{tpu_custom_call.1} parent=1 // pred_check_branch
      %14 = sbr.rel (0) target = $region9
    $region8: #{tpu_custom_call.1} parent=1 // pred_region
      _
    $region9: #{tpu_custom_call.1} parent=1 // pred_fallthru
      _
    // Predicated region
    $region10: #{tpu_custom_call.1} parent=1 // pred_check
      _
    $region11: #{tpu_custom_call.1} parent=1 // pred_check_branch
      %16 = sbr.rel (0) target = $region13
    $region12: #{tpu_custom_call.1} parent=1 // pred_region
      _
    $region13: #{tpu_custom_call.1} parent=1 // pred_fallthru
      _
    // Predicated region
    $region14: #{tpu_custom_call.1} parent=1 // pred_check
      _
    $region15: #{tpu_custom_call.1} parent=1 // pred_check_branch
      %18 = sbr.rel (0) target = $region17
    $region16: #{tpu_custom_call.1} parent=1 // pred_region
      _
    $region17: #{tpu_custom_call.1} parent=1 // pred_fallthru
      _
    // Predicated region
    $region18: #{tpu_custom_call.1} parent=1 // pred_check
      _
    $region19: #{tpu_custom_call.1} parent=1 // pred_check_branch
      %20 = sbr.rel (0) target = $region21
    $region20: #{tpu_custom_call.1} parent=1 // pred_region
      _
    $region21: #{tpu_custom_call.1} parent=1 // pred_fallthru
      _
    %v21 = vld [vmem:[%s0] sm:$0xff]
    %v22 = vld [vmem:[%s1] sm:$0xff]
    %v23 = vld [vmem:[%s2] sm:$0x1]
    %v25 = vlaneseq
    %v26 = vshrl.u32 %v25, 7
    %v27 = vsub.s32 0, %v26
    %v28 = vrot.slane %v23, %v27
    %vm30 = vcmask 64512
    %v32 = vsel %vm30, %v21, 0
    %34 = vmatprep.subr.mxu0 0.0
    %35 = vmatpush1.msra.mxu0 %v22
    %36 = vmatprep.subr.mxu0 0.0
    %37 = vmatpush1.msra.mxu0 0.0
    %38 = vmatprep.subr.mxu0 0.0
    %39 = vmatpush1.msra.mxu0 0.0
    %40 = vmatprep.subr.mxu0 0.0
    %41 = vmatpush1.msra.mxu0 0.0
    %42 = vmatprep.subr.mxu0 0.0
    %43 = vmatpush1.msra.mxu0 0.0
    %44 = vmatprep.subr.mxu0 0.0
    %45 = vmatpush1.msra.mxu0 0.0
    %46 = vmatprep.subr.mxu0 0.0
    %47 = vmatpush1.msra.mxu0 0.0
    %48 = vmatprep.subr.mxu0 0.0
    %49 = vmatpush1.msra.mxu0 0.0
    %50 = vmatprep.subr.mxu0 0.0
    %51 = vmatpush1.msra.mxu0 0.0
    %52 = vmatprep.subr.mxu0 0.0
    %53 = vmatpush1.msra.mxu0 0.0
    %54 = vmatprep.subr.mxu0 0.0
    %55 = vmatpush1.msra.mxu0 0.0
    %56 = vmatprep.subr.mxu0 0.0
    %57 = vmatpush1.msra.mxu0 0.0
    %58 = vmatprep.subr.mxu0 0.0
    %59 = vmatpush1.msra.mxu0 0.0
    %60 = vmatprep.subr.mxu0 0.0
    %61 = vmatpush1.msra.mxu0 0.0
    %62 = vmatprep.subr.mxu0 0.0
    %63 = vmatpush1.msra.mxu0 0.0
    %64 = vmatprep.subr.mxu0 0.0
    %65 = vmatpush1.msra.mxu0 0.0
    %66 = vmatprep.subr.mxu0 0.0
    %67 = vmatpush1.msra.mxu0 0.0
    %68 = vmatprep.subr.mxu0 0.0
    %69 = vmatpush1.msra.mxu0 0.0
    %70 = vmatprep.subr.mxu0 0.0
    %71 = vmatpush1.msra.mxu0 0.0
    %72 = vmatprep.subr.mxu0 0.0
    %73 = vmatpush1.msra.mxu0 0.0
    %74 = vmatprep.subr.mxu0 0.0
    %75 = vmatpush1.msra.mxu0 0.0
    %76 = vmatprep.subr.mxu0 0.0
    %77 = vmatpush1.msra.mxu0 0.0
    %78 = vmatprep.subr.mxu0 0.0
    %79 = vmatpush1.msra.mxu0 0.0
    %80 = vmatprep.subr.mxu0 0.0
    %81 = vmatpush1.msra.mxu0 0.0
    %82 = vmatprep.subr.mxu0 0.0
    %83 = vmatpush1.msra.mxu0 0.0
    %84 = vmatprep.subr.mxu0 0.0
    %85 = vmatpush1.msra.mxu0 0.0
    %86 = vmatprep.subr.mxu0 0.0
    %87 = vmatpush1.msra.mxu0 0.0
    %88 = vmatprep.subr.mxu0 0.0
    %89 = vmatpush1.msra.mxu0 0.0
    %90 = vmatprep.subr.mxu0 0.0
    %91 = vmatpush1.msra.mxu0 0.0
    %92 = vmatprep.subr.mxu0 0.0
    %93 = vmatpush1.msra.mxu0 0.0
    %94 = vmatprep.subr.mxu0 0.0
    %95 = vmatpush1.msra.mxu0 0.0
    %96 = vmatprep.subr.mxu0 0.0
    %97 = vmatpush1.msra.mxu0 0.0
    %98 = vmatprep.mubr.f32.mxu0 0.0
    %99 = vmatmul.mubr.f32.gmra.mrb[0].mxu0 %v32
    %v100 = vpop.f32.mrb[0].mxu0
    %v101 = vadd.f32 %v28, %v100
    %v102 = vpop.f32.mrb[0].mxu0
    %103 = vdwg.mxu0
    %v104 = vmax.f32 %v101, 0.0
    %v105 = vld [vmem:[%s3] sm:$0xff]
    %v106 = vld [vmem:[%s3 + $0x8] sm:$0xff]
    %v107 = vld [vmem:[%s3 + $0x10] sm:$0xff]
    %v108 = vld [vmem:[%s3 + $0x18] sm:$0xff]
    %v109 = vld [vmem:[%s3 + $0x20] sm:$0xff]
    %v110 = vld [vmem:[%s3 + $0x28] sm:$0xff]
    %v111 = vld [vmem:[%s3 + $0x30] sm:$0xff]
    %v112 = vld [vmem:[%s3 + $0x38] sm:$0xff]
    %v113 = vld [vmem:[%s3 + $0x40] sm:$0xff]
    %v114 = vld [vmem:[%s3 + $0x48] sm:$0xff]
    %v115 = vld [vmem:[%s3 + $0x50] sm:$0xff]
    %v116 = vld [vmem:[%s3 + $0x58] sm:$0xff]
    %v117 = vld [vmem:[%s3 + $0x60] sm:$0xff]
    %v118 = vld [vmem:[%s3 + $0x68] sm:$0xff]
    %v119 = vld [vmem:[%s3 + $0x70] sm:$0xff]
    %v120 = vld [vmem:[%s3 + $0x78] sm:$0xff]
    %v121 = vld [vmem:[%s4] sm:$0x1]
    %v123 = vlaneseq
    %v124 = vshrl.u32 %v123, 7
    %v125 = vsub.s32 0, %v124
    %v126 = vrot.slane %v121, %v125
    %128 = vmatprep.subr.mxu0 0.0
    %129 = vmatpush1.msra.mxu0 %v105
    %130 = vmatprep.subr.mxu0 0.0
    %131 = vmatpush1.msra.mxu0 %v106
    %132 = vmatprep.subr.mxu0 0.0
    %133 = vmatpush1.msra.mxu0 %v107
    %134 = vmatprep.subr.mxu0 0.0
    %135 = vmatpush1.msra.mxu0 %v108
    %136 = vmatprep.subr.mxu0 0.0
    %137 = vmatpush1.msra.mxu0 %v109
    %138 = vmatprep.subr.mxu0 0.0
    %139 = vmatpush1.msra.mxu0 %v110
    %140 = vmatprep.subr.mxu0 0.0
    %141 = vmatpush1.msra.mxu0 %v111
    %142 = vmatprep.subr.mxu0 0.0
    %143 = vmatpush1.msra.mxu0 %v112
    %144 = vmatprep.subr.mxu0 0.0
    %145 = vmatpush1.msra.mxu0 %v113
    %146 = vmatprep.subr.mxu0 0.0
    %147 = vmatpush1.msra.mxu0 %v114
    %148 = vmatprep.subr.mxu0 0.0
    %149 = vmatpush1.msra.mxu0 %v115
    %150 = vmatprep.subr.mxu0 0.0
    %151 = vmatpush1.msra.mxu0 %v116
    %152 = vmatprep.subr.mxu0 0.0
    %153 = vmatpush1.msra.mxu0 %v117
    %154 = vmatprep.subr.mxu0 0.0
    %155 = vmatpush1.msra.mxu0 %v118
    %156 = vmatprep.subr.mxu0 0.0
    %157 = vmatpush1.msra.mxu0 %v119
    %158 = vmatprep.subr.mxu0 0.0
    %159 = vmatpush1.msra.mxu0 %v120
    %160 = vmatprep.subr.mxu0 0.0
    %161 = vmatpush1.msra.mxu0 0.0
    %162 = vmatprep.subr.mxu0 0.0
    %163 = vmatpush1.msra.mxu0 0.0
    %164 = vmatprep.subr.mxu0 0.0
    %165 = vmatpush1.msra.mxu0 0.0
    %166 = vmatprep.subr.mxu0 0.0
    %167 = vmatpush1.msra.mxu0 0.0
    %168 = vmatprep.subr.mxu0 0.0
    %169 = vmatpush1.msra.mxu0 0.0
    %170 = vmatprep.subr.mxu0 0.0
    %171 = vmatpush1.msra.mxu0 0.0
    %172 = vmatprep.subr.mxu0 0.0
    %173 = vmatpush1.msra.mxu0 0.0
    %174 = vmatprep.subr.mxu0 0.0
    %175 = vmatpush1.msra.mxu0 0.0
    %176 = vmatprep.subr.mxu0 0.0
    %177 = vmatpush1.msra.mxu0 0.0
    %178 = vmatprep.subr.mxu0 0.0
    %179 = vmatpush1.msra.mxu0 0.0
    %180 = vmatprep.subr.mxu0 0.0
    %181 = vmatpush1.msra.mxu0 0.0
    %182 = vmatprep.subr.mxu0 0.0
    %183 = vmatpush1.msra.mxu0 0.0
    %184 = vmatprep.subr.mxu0 0.0
    %185 = vmatpush1.msra.mxu0 0.0
    %186 = vmatprep.subr.mxu0 0.0
    %187 = vmatpush1.msra.mxu0 0.0
    %188 = vmatprep.subr.mxu0 0.0
    %189 = vmatpush1.msra.mxu0 0.0
    %190 = vmatprep.subr.mxu0 0.0
    %191 = vmatpush1.msra.mxu0 0.0
    %192 = vmatprep.mubr.f32.mxu0 0.0
    %193 = vmatmul.mubr.f32.gmra.mrb[0].mxu0 %v104
    %v194 = vpop.f32.mrb[0].mxu0
    %v195 = vadd.f32 %v126, %v194
    %v196 = vpop.f32.mrb[0].mxu0
    %197 = vdwg.mxu0
    %199 = vrot.lane.b32.xlu0 %v195, 1
    %v200 = vpop.permute.xlu0 %199
    %v202 = vsub.f32 %v195, %v200
    %v203 = vmul.f32 %v202, 1.442695
    %v204 = vpow.pop %v203
    %v205 = vadd.f32 %v204, 1.0
    %v206 = vrcp.pop %v205
    %v207 = vsub.f32 1.0, %v206
    %208 = vst.msk [vmem:[#allocation2] sm:$0xff] %vm30, %v195
    %210 = vrot.lane.b32.xlu0 %v206, 127
    %v211 = vpop.permute.xlu0 %210
    %vm213 = vcmask 7168
    %214 = vst.msk [vmem:[#allocation2] sm:$0xff] %vm213, %v211
    %vm215 = vcmask 15368
    %216 = vst.msk [vmem:[#allocation2] sm:$0xff] %vm215, %v207
    // Predicated region
    $region22: #{tpu_custom_call.1} parent=1 // pred_check
      _
    $region23: #{tpu_custom_call.1} parent=1 // pred_check_branch
      %218 = sbr.rel (0) target = $region25
    $region24: #{tpu_custom_call.1} parent=1 // pred_region
      %s220 = ssub.s32 128, 128
      %221 = vsyncadd [#allocation3], %s220
      %s223 = sshll.u32 [#allocation2], 4
      %s224 = int_to_ptr.vmem [resolvable:$true] %s223
      %226 = dma.vmem_to_hbm [thread:$0]  %s224, 128, %s5, [#allocation3]
    $region25: #{tpu_custom_call.1} parent=1 // pred_fallthru
      _
    // Predicated region
    $region26: #{tpu_custom_call.1} parent=1 // pred_check
      _
    $region27: #{tpu_custom_call.1} parent=1 // pred_check_branch
      %228 = sbr.rel (0) target = $region29
    $region28: #{tpu_custom_call.1} parent=1 // pred_region
      %229 = dma.done [#allocation3], 128
    $region29: #{tpu_custom_call.1} parent=1 // pred_fallthru
      _
    %230 = vsyncpa [#allocation3], 1

</llo_original>
